<compile_context>
chip_gen: v5e
topology: v5e:2x2
jax: 0.10.0
libtpu: 0.0.40
codegen_flags: <defaults>
</compile_context>

<pallas_src>
import math
import functools

import jax
import jax.numpy as jnp
import numpy as np
from jax import lax
from jax.experimental import pallas as pl
from jax.experimental.pallas import tpu as pltpu


# ----------------------------- Pallas kernel --------------------------------
def transformer_block_kernel(
    x_ref,        # (B*S, E)        f32   (batch folded into rows)
    wqkv_ref,     # (E, 3E)         bf16  (pre-transposed; Q slice pre-scaled by 1/sqrt(hd))
    wo_ref,       # (nh, hd, E)     bf16  (pre-transposed + head-split out_proj weight)
    w1_ref,       # (E, H)          bf16  (pre-transposed ff1 weight)
    w2_ref,       # (H, E)          bf16  (pre-transposed ff2 weight)
    bias_ref,     # (8, max(3E,H))  f32   packed biases / LN params (see wrapper)
    o_ref,        # (B*S, E)        f32
    *,
    num_heads: int,
    seq_len: int,
):
    xm = x_ref[...]                                    # (M, E) f32, M = B*S
    M, E = xm.shape
    H = w1_ref.shape[1]
    hd = E // num_heads

    bias = bias_ref[...]                               # (8, W) f32 — one operand, slice rows
    b_qkv = bias[0, : 3 * E]
    b_o   = bias[1, :E]
    g1    = bias[2, :E]
    be1   = bias[3, :E]
    b_ff1 = bias[4, :H]
    b_ff2 = bias[5, :E]
    g2    = bias[6, :E]
    be2   = bias[7, :E]

    # ---- QKV projection: ONE 2D matmul with batch folded into M; bf16 in, f32 acc ----
    qkv = jnp.dot(xm.astype(jnp.bfloat16), wqkv_ref[...],
                  preferred_element_type=jnp.float32) + b_qkv          # (M, 3E) f32

    # ---- head-major stacks: single stack, single bf16 cast (scale already folded into Q) ----
    pieces = [qkv[:, ci * E + h * hd: ci * E + (h + 1) * hd]
              for ci in range(3) for h in range(num_heads)]
    qkv_h = jnp.stack(pieces, axis=0).astype(jnp.bfloat16)             # (3*nh, M, hd)
    q3 = qkv_h[0 * num_heads: 1 * num_heads]                           # (nh, M, hd)
    k3 = qkv_h[1 * num_heads: 2 * num_heads]
    v3 = qkv_h[2 * num_heads: 3 * num_heads]

    # ---- combined causal + same-batch mask over the folded (B*S) key axis ----
    rows = lax.broadcasted_iota(jnp.int32, (M, M), 0)
    cols = lax.broadcasted_iota(jnp.int32, (M, M), 1)
    inv_s = jnp.float32(1.0 / seq_len)
    rb = jnp.floor((rows.astype(jnp.float32) + 0.5) * inv_s)   # row batch id (no vector int-div)
    cb = jnp.floor((cols.astype(jnp.float32) + 0.5) * inv_s)   # key batch id
    keep = jnp.logical_and(rb == cb, cols <= rows)
    mask_bias = jnp.where(keep, jnp.float32(0.0), jnp.float32(-1e30))  # (M, M) f32

    # ---- multi-head attention (softmax statistics in f32) ----
    scores = jnp.einsum("hqd,hkd->hqk", q3, k3,
                        preferred_element_type=jnp.float32)            # (nh, M, M) f32
    scores = scores + mask_bias[None, :, :]
    scores = scores - jnp.max(scores, axis=-1, keepdims=True)
    p = jnp.exp(scores)
    p = p * pl.reciprocal(jnp.sum(p, axis=-1, keepdims=True), approx=True)
    ctx = jnp.einsum("hqk,hkd->hqd", p.astype(jnp.bfloat16), v3,
                     preferred_element_type=jnp.float32)               # (nh, M, hd) f32

    # ---- output projection: one batched matmul over heads + head-axis reduction ----
    attn = jnp.einsum("hmd,hde->hme", ctx.astype(jnp.bfloat16), wo_ref[...],
                      preferred_element_type=jnp.float32)              # (nh, M, E) f32
    attn = jnp.sum(attn, axis=0) + b_o                                 # (M, E)

    # ---- residual + LayerNorm 1 (dropout1 = identity in eval mode) ----
    x1 = xm + attn
    mu = jnp.mean(x1, axis=-1, keepdims=True)
    var = jnp.mean((x1 - mu) ** 2, axis=-1, keepdims=True)
    x1 = (x1 - mu) * lax.rsqrt(var + 1e-5) * g1 + be1

    # ---- feed-forward: Linear -> SiLU -> Linear (inner Dropout = identity) ----
    hid = jnp.dot(x1.astype(jnp.bfloat16), w1_ref[...],
                  preferred_element_type=jnp.float32) + b_ff1          # (M, H) f32
    hid = hid * jax.nn.sigmoid(hid)                                    # SiLU in f32 (EUP)
    ffo = jnp.dot(hid.astype(jnp.bfloat16), w2_ref[...],
                  preferred_element_type=jnp.float32) + b_ff2          # (M, E) f32

    # ---- residual + LayerNorm 2 (dropout2 = identity) ----
    x2 = x1 + ffo
    mu2 = jnp.mean(x2, axis=-1, keepdims=True)
    var2 = jnp.mean((x2 - mu2) ** 2, axis=-1, keepdims=True)
    x2 = (x2 - mu2) * lax.rsqrt(var2 + 1e-5) * g2 + be2

    o_ref[...] = x2.astype(o_ref.dtype)


# ------------------------------ Wrapper --------------------------------------
def transformer_block(x, params, num_heads):
    """x: (B, S, E) float32.  params: PyTorch-layout (out_features, in_features) weights."""
    B, S, E = x.shape
    H = params["ff1_w"].shape[0]
    hd = E // num_heads
    M = B * S
    scale = 1.0 / math.sqrt(hd)
    bf16 = jnp.bfloat16

    # ---- wrapper-side layout plumbing, done once at trace time ----
    wqkv = params["in_proj_w"].T                                       # (E, 3E) f32
    wqkv = wqkv.at[:, :E].multiply(scale).astype(bf16)                 # fold 1/sqrt(hd) into Q
    bqkv = params["in_proj_b"].at[:E].multiply(scale)                  # ... and into the Q bias
    wo_heads = params["out_proj_w"].T.reshape(num_heads, hd, E).astype(bf16)   # (nh, hd, E)
    w1 = params["ff1_w"].T.astype(bf16)                                # (E, H)
    w2 = params["ff2_w"].T.astype(bf16)                                # (H, E)

    # Packed bias / LayerNorm slab: 8 rows, each padded to max(3E, H, E) lanes.
    Wpad = max(3 * E, H, E)

    def padrow(v):
        v = v.astype(jnp.float32)
        return jnp.pad(v, (0, Wpad - v.shape[0]))

    bias_slab = jnp.stack([
        padrow(bqkv), padrow(params["out_proj_b"]),
        padrow(params["ln1_g"]), padrow(params["ln1_b"]),
        padrow(params["ff1_b"]), padrow(params["ff2_b"]),
        padrow(params["ln2_g"]), padrow(params["ln2_b"]),
    ], axis=0)                                                         # (8, Wpad) f32

    kernel = functools.partial(transformer_block_kernel,
                               num_heads=num_heads, seq_len=S)

    flops = (2 * M * E * 3 * E                      # qkv projection
             + num_heads * 4 * M * M * hd           # scores + p@v (folded key axis)
             + num_heads * 2 * M * hd * E           # out projection
             + 2 * M * E * H + 2 * M * H * E)       # ffn
    transcendentals = num_heads * M * M + M * H     # softmax exp + SiLU sigmoid
    bytes_accessed = (2 * M * E * 4                                    # x in + out (f32)
                      + 2 * (E * 3 * E + E * E + 2 * E * H)            # bf16 weights
                      + 4 * 8 * Wpad)                                  # packed f32 slab

    full = lambda shape: pl.BlockSpec(shape, lambda i: (0,) * len(shape))

    out2d = pl.pallas_call(
        kernel,
        out_shape=jax.ShapeDtypeStruct((M, E), jnp.float32),
        grid=(1,),                                  # single step: whole batch folded into M
        in_specs=[
            pl.BlockSpec((M, E), lambda i: (0, 0)),     # x (B*S, E)
            full((E, 3 * E)),                           # in_proj (pre-transposed, Q pre-scaled)
            full((num_heads, hd, E)),                   # out_proj (head-split)
            full((E, H)),                               # ff1 weight
            full((H, E)),                               # ff2 weight
            full((8, Wpad)),                            # packed biases / LN params
        ],
        out_specs=pl.BlockSpec((M, E), lambda i: (0, 0)),
        compiler_params=pltpu.CompilerParams(
            dimension_semantics=("arbitrary",),
            vmem_limit_bytes=32 * 1024 * 1024),
        cost_estimate=pl.CostEstimate(
            flops=int(flops),
            transcendentals=int(transcendentals),
            bytes_accessed=int(bytes_accessed)),
    )(x.reshape(M, E), wqkv, wo_heads, w1, w2, bias_slab)

    return out2d.reshape(B, S, E)


# ------------------------- Pure-JAX reference ---------------------------------
def reference_block(x, p, num_heads):
    B, S, E = x.shape
    hd = E // num_heads
    qkv = jnp.einsum("bse,fe->bsf", x, p["in_proj_w"]) + p["in_proj_b"]
    q, k, v = qkv[..., :E], qkv[..., E:2 * E], qkv[..., 2 * E:]
    q = q.reshape(B, S, num_heads, hd).transpose(0, 2, 1, 3)
    k = k.reshape(B, S, num_heads, hd).transpose(0, 2, 1, 3)
    v = v.reshape(B, S, num_heads, hd).transpose(0, 2, 1, 3)
    scores = jnp.einsum("bhqd,bhkd->bhqk", q, k) / math.sqrt(hd)
    mask = jnp.triu(jnp.full((S, S), -1e30, jnp.float32), k=1)
    scores = scores + mask
    attn = jax.nn.softmax(scores, axis=-1)
    ctx = jnp.einsum("bhqk,bhkd->bhqd", attn, v).transpose(0, 2, 1, 3).reshape(B, S, E)
    ctx = jnp.einsum("bse,fe->bsf", ctx, p["out_proj_w"]) + p["out_proj_b"]

    def ln(z, g, b):
        mu = jnp.mean(z, -1, keepdims=True)
        var = jnp.mean((z - mu) ** 2, -1, keepdims=True)
        return (z - mu) / jnp.sqrt(var + 1e-5) * g + b

    x1 = ln(x + ctx, p["ln1_g"], p["ln1_b"])
    h = jnp.einsum("bse,fe->bsf", x1, p["ff1_w"]) + p["ff1_b"]
    h = h * jax.nn.sigmoid(h)
    ffo = jnp.einsum("bsh,fh->bsf", h, p["ff2_w"]) + p["ff2_b"]
    return ln(x1 + ffo, p["ln2_g"], p["ln2_b"])


# --------------------------------- Main ---------------------------------------
if __name__ == "__main__":
    # Small shapes consistent with (batch, seq, embed_dim)
    B, S, E = 2, 8, 32
    NUM_HEADS = 4
    FF_HIDDEN = 64

    key = jax.random.PRNGKey(0)
    ks = jax.random.split(key, 9)

    def init(k, shape, scale=0.1):
        return jax.random.normal(k, shape, jnp.float32) * scale

    params = {
        "in_proj_w": init(ks[0], (3 * E, E)),
        "in_proj_b": init(ks[1], (3 * E,)),
        "out_proj_w": init(ks[2], (E, E)),
        "out_proj_b": init(ks[3], (E,)),
        "ln1_g": jnp.ones((E,), jnp.float32),
        "ln1_b": jnp.zeros((E,), jnp.float32),
        "ff1_w": init(ks[4], (FF_HIDDEN, E)),
        "ff1_b": init(ks[5], (FF_HIDDEN,)),
        "ff2_w": init(ks[6], (E, FF_HIDDEN)),
        "ff2_b": init(ks[7], (E,)),
        "ln2_g": jnp.ones((E,), jnp.float32),
        "ln2_b": jnp.zeros((E,), jnp.float32),
    }

    x = jax.random.normal(ks[8], (B, S, E), jnp.float32)

    out = jax.block_until_ready(transformer_block(x, params, NUM_HEADS))
    ref = jax.block_until_ready(reference_block(x, params, NUM_HEADS))

    # bf16 MXU inputs with f32 accumulation; softmax/LN in f32 -> 2e-2 tolerance is comfortable.
    np.testing.assert_allclose(np.asarray(out), np.asarray(ref), rtol=2e-2, atol=2e-2)

    print("KERNEL_OK")
</pallas_src>

<mosaic_0001>
module attributes {stable_mosaic.version = 11 : i64} {
  func.func @transformer_block_kernel(%arg0: i32, %arg1: memref<16x32xf32, #tpu.memory_space<vmem>>, %arg2: memref<32x96xbf16, #tpu.memory_space<vmem>>, %arg3: memref<4x8x32xbf16, #tpu.memory_space<vmem>>, %arg4: memref<32x64xbf16, #tpu.memory_space<vmem>>, %arg5: memref<64x32xbf16, #tpu.memory_space<vmem>>, %arg6: memref<8x96xf32, #tpu.memory_space<vmem>>, %arg7: memref<16x32xf32, #tpu.memory_space<vmem>>) attributes {dimension_semantics = [#tpu.dimension_semantics<arbitrary>], iteration_bounds = array<i64: 1>, scalar_prefetch = 0 : i64, scratch_operands = 0 : i64, tpu.core_type = #tpu.core_type<tc>, window_params = [{pipeline_mode = #tpu.pipeline_mode<synchronous>, transform_indices = @transform_0, window_bounds = array<i64: 16, 32>}, {pipeline_mode = #tpu.pipeline_mode<synchronous>, transform_indices = @transform_1, window_bounds = array<i64: 32, 96>}, {pipeline_mode = #tpu.pipeline_mode<synchronous>, transform_indices = @transform_2, window_bounds = array<i64: 4, 8, 32>}, {pipeline_mode = #tpu.pipeline_mode<synchronous>, transform_indices = @transform_3, window_bounds = array<i64: 32, 64>}, {pipeline_mode = #tpu.pipeline_mode<synchronous>, transform_indices = @transform_4, window_bounds = array<i64: 64, 32>}, {pipeline_mode = #tpu.pipeline_mode<synchronous>, transform_indices = @transform_5, window_bounds = array<i64: 8, 96>}, {pipeline_mode = #tpu.pipeline_mode<synchronous>, transform_indices = @transform_6, window_bounds = array<i64: 16, 32>}]} {
    %c0 = arith.constant 0 : index
    %c0_0 = arith.constant 0 : index
    %0 = vector.load %arg1[%c0, %c0_0] : memref<16x32xf32, #tpu.memory_space<vmem>>, vector<16x32xf32>
    %c0_1 = arith.constant 0 : index
    %c0_2 = arith.constant 0 : index
    %1 = vector.load %arg6[%c0_1, %c0_2] : memref<8x96xf32, #tpu.memory_space<vmem>>, vector<8x96xf32>
    %2 = vector.extract_strided_slice %1 {offsets = [0, 0], sizes = [1, 96], strides = [1, 1]} : vector<8x96xf32> to vector<1x96xf32>
    %3 = vector.shape_cast %2 : vector<1x96xf32> to vector<96xf32>
    %4 = vector.extract_strided_slice %1 {offsets = [1, 0], sizes = [1, 32], strides = [1, 1]} : vector<8x96xf32> to vector<1x32xf32>
    %5 = vector.shape_cast %4 : vector<1x32xf32> to vector<32xf32>
    %6 = vector.extract_strided_slice %1 {offsets = [2, 0], sizes = [1, 32], strides = [1, 1]} : vector<8x96xf32> to vector<1x32xf32>
    %7 = vector.shape_cast %6 : vector<1x32xf32> to vector<32xf32>
    %8 = vector.extract_strided_slice %1 {offsets = [3, 0], sizes = [1, 32], strides = [1, 1]} : vector<8x96xf32> to vector<1x32xf32>
    %9 = vector.shape_cast %8 : vector<1x32xf32> to vector<32xf32>
    %10 = vector.extract_strided_slice %1 {offsets = [4, 0], sizes = [1, 64], strides = [1, 1]} : vector<8x96xf32> to vector<1x64xf32>
    %11 = vector.shape_cast %10 : vector<1x64xf32> to vector<64xf32>
    %12 = vector.extract_strided_slice %1 {offsets = [5, 0], sizes = [1, 32], strides = [1, 1]} : vector<8x96xf32> to vector<1x32xf32>
    %13 = vector.shape_cast %12 : vector<1x32xf32> to vector<32xf32>
    %14 = vector.extract_strided_slice %1 {offsets = [6, 0], sizes = [1, 32], strides = [1, 1]} : vector<8x96xf32> to vector<1x32xf32>
    %15 = vector.shape_cast %14 : vector<1x32xf32> to vector<32xf32>
    %16 = vector.extract_strided_slice %1 {offsets = [7, 0], sizes = [1, 32], strides = [1, 1]} : vector<8x96xf32> to vector<1x32xf32>
    %17 = vector.shape_cast %16 : vector<1x32xf32> to vector<32xf32>
    %18 = arith.truncf %0 : vector<16x32xf32> to vector<16x32xbf16>
    %c0_3 = arith.constant 0 : index
    %c0_4 = arith.constant 0 : index
    %19 = vector.load %arg2[%c0_3, %c0_4] : memref<32x96xbf16, #tpu.memory_space<vmem>>, vector<32x96xbf16>
    %cst = arith.constant dense<0.000000e+00> : vector<16x96xf32>
    %20 = tpu.matmul %18, %19, %cst {dimension_numbers = #tpu.dot_dimension_numbers<[1], [0], [0], [1], [0, 0, 1, 1], [], []>} : vector<16x32xbf16>, vector<32x96xbf16>, vector<16x96xf32> -> vector<16x96xf32>
    %21 = vector.shape_cast %3 : vector<96xf32> to vector<1x96xf32>
    %22 = vector.broadcast %21 : vector<1x96xf32> to vector<16x96xf32>
    %23 = arith.addf %20, %22 : vector<16x96xf32>
    %24 = vector.extract_strided_slice %23 {offsets = [0, 0], sizes = [16, 8], strides = [1, 1]} : vector<16x96xf32> to vector<16x8xf32>
    %25 = vector.extract_strided_slice %23 {offsets = [0, 8], sizes = [16, 8], strides = [1, 1]} : vector<16x96xf32> to vector<16x8xf32>
    %26 = vector.extract_strided_slice %23 {offsets = [0, 16], sizes = [16, 8], strides = [1, 1]} : vector<16x96xf32> to vector<16x8xf32>
    %27 = vector.extract_strided_slice %23 {offsets = [0, 24], sizes = [16, 8], strides = [1, 1]} : vector<16x96xf32> to vector<16x8xf32>
    %28 = vector.extract_strided_slice %23 {offsets = [0, 32], sizes = [16, 8], strides = [1, 1]} : vector<16x96xf32> to vector<16x8xf32>
    %29 = vector.extract_strided_slice %23 {offsets = [0, 40], sizes = [16, 8], strides = [1, 1]} : vector<16x96xf32> to vector<16x8xf32>
    %30 = vector.extract_strided_slice %23 {offsets = [0, 48], sizes = [16, 8], strides = [1, 1]} : vector<16x96xf32> to vector<16x8xf32>
    %31 = vector.extract_strided_slice %23 {offsets = [0, 56], sizes = [16, 8], strides = [1, 1]} : vector<16x96xf32> to vector<16x8xf32>
    %32 = vector.extract_strided_slice %23 {offsets = [0, 64], sizes = [16, 8], strides = [1, 1]} : vector<16x96xf32> to vector<16x8xf32>
    %33 = vector.extract_strided_slice %23 {offsets = [0, 72], sizes = [16, 8], strides = [1, 1]} : vector<16x96xf32> to vector<16x8xf32>
    %34 = vector.extract_strided_slice %23 {offsets = [0, 80], sizes = [16, 8], strides = [1, 1]} : vector<16x96xf32> to vector<16x8xf32>
    %35 = vector.extract_strided_slice %23 {offsets = [0, 88], sizes = [16, 8], strides = [1, 1]} : vector<16x96xf32> to vector<16x8xf32>
    %36 = vector.shape_cast %24 : vector<16x8xf32> to vector<1x16x8xf32>
    %37 = vector.shape_cast %25 : vector<16x8xf32> to vector<1x16x8xf32>
    %38 = vector.shape_cast %26 : vector<16x8xf32> to vector<1x16x8xf32>
    %39 = vector.shape_cast %27 : vector<16x8xf32> to vector<1x16x8xf32>
    %40 = vector.shape_cast %28 : vector<16x8xf32> to vector<1x16x8xf32>
    %41 = vector.shape_cast %29 : vector<16x8xf32> to vector<1x16x8xf32>
    %42 = vector.shape_cast %30 : vector<16x8xf32> to vector<1x16x8xf32>
    %43 = vector.shape_cast %31 : vector<16x8xf32> to vector<1x16x8xf32>
    %44 = vector.shape_cast %32 : vector<16x8xf32> to vector<1x16x8xf32>
    %45 = vector.shape_cast %33 : vector<16x8xf32> to vector<1x16x8xf32>
    %46 = vector.shape_cast %34 : vector<16x8xf32> to vector<1x16x8xf32>
    %47 = vector.shape_cast %35 : vector<16x8xf32> to vector<1x16x8xf32>
    %48 = tpu.concatenate %36, %37, %38, %39, %40, %41, %42, %43, %44, %45, %46, %47 in 0 : vector<1x16x8xf32>, vector<1x16x8xf32>, vector<1x16x8xf32>, vector<1x16x8xf32>, vector<1x16x8xf32>, vector<1x16x8xf32>, vector<1x16x8xf32>, vector<1x16x8xf32>, vector<1x16x8xf32>, vector<1x16x8xf32>, vector<1x16x8xf32>, vector<1x16x8xf32> -> vector<12x16x8xf32>
    %49 = arith.truncf %48 : vector<12x16x8xf32> to vector<12x16x8xbf16>
    %50 = vector.extract_strided_slice %49 {offsets = [0, 0, 0], sizes = [4, 16, 8], strides = [1, 1, 1]} : vector<12x16x8xbf16> to vector<4x16x8xbf16>
    %51 = vector.extract_strided_slice %49 {offsets = [4, 0, 0], sizes = [4, 16, 8], strides = [1, 1, 1]} : vector<12x16x8xbf16> to vector<4x16x8xbf16>
    %52 = vector.extract_strided_slice %49 {offsets = [8, 0, 0], sizes = [4, 16, 8], strides = [1, 1, 1]} : vector<12x16x8xbf16> to vector<4x16x8xbf16>
    %53 = tpu.iota {dimensions = array<i32: 0>} : vector<16x16xi32>
    %54 = tpu.iota {dimensions = array<i32: 1>} : vector<16x16xi32>
    %55 = arith.sitofp %53 : vector<16x16xi32> to vector<16x16xf32>
    %cst_5 = arith.constant 5.000000e-01 : f32
    %56 = vector.broadcast %cst_5 : f32 to vector<16x16xf32>
    %57 = arith.addf %55, %56 : vector<16x16xf32>
    %cst_6 = arith.constant 1.250000e-01 : f32
    %58 = vector.broadcast %cst_6 : f32 to vector<16x16xf32>
    %59 = arith.mulf %57, %58 : vector<16x16xf32>
    %60 = math.floor %59 : vector<16x16xf32>
    %61 = arith.sitofp %54 : vector<16x16xi32> to vector<16x16xf32>
    %cst_7 = arith.constant 5.000000e-01 : f32
    %62 = vector.broadcast %cst_7 : f32 to vector<16x16xf32>
    %63 = arith.addf %61, %62 : vector<16x16xf32>
    %cst_8 = arith.constant 1.250000e-01 : f32
    %64 = vector.broadcast %cst_8 : f32 to vector<16x16xf32>
    %65 = arith.mulf %63, %64 : vector<16x16xf32>
    %66 = math.floor %65 : vector<16x16xf32>
    %67 = arith.cmpf oeq, %60, %66 : vector<16x16xf32>
    %68 = arith.cmpi sle, %54, %53 : vector<16x16xi32>
    %69 = arith.andi %67, %68 : vector<16x16xi1>
    %cst_9 = arith.constant 0.000000e+00 : f32
    %cst_10 = arith.constant -1.000000e+30 : f32
    %70 = vector.broadcast %cst_9 : f32 to vector<16x16xf32>
    %71 = vector.broadcast %cst_10 : f32 to vector<16x16xf32>
    %72 = arith.select %69, %70, %71 : vector<16x16xi1>, vector<16x16xf32>
    "tpu.trace_start"() <{level = 10 : i32, message = "hqd,hkd->hqk"}> : () -> ()
    %cst_11 = arith.constant dense<0.000000e+00> : vector<4x16x16xf32>
    %73 = tpu.matmul %50, %51, %cst_11 {dimension_numbers = #tpu.dot_dimension_numbers<[2], [2], [1], [1], [0, 0, 0, 1, 1, 1], [0], [0]>} : vector<4x16x8xbf16>, vector<4x16x8xbf16>, vector<4x16x16xf32> -> vector<4x16x16xf32>
    "tpu.trace_stop"() : () -> ()
    %74 = vector.shape_cast %72 : vector<16x16xf32> to vector<1x16x16xf32>
    %75 = vector.broadcast %74 : vector<1x16x16xf32> to vector<4x16x16xf32>
    %76 = arith.addf %73, %75 : vector<4x16x16xf32>
    %cst_12 = arith.constant dense<0xFF800000> : vector<4x16xf32>
    %77 = vector.multi_reduction <maximumf>, %76, %cst_12 [2] : vector<4x16x16xf32> to vector<4x16xf32>
    %78 = vector.shape_cast %77 : vector<4x16xf32> to vector<4x16x1xf32>
    %79 = vector.broadcast %78 : vector<4x16x1xf32> to vector<4x16x16xf32>
    %80 = arith.subf %76, %79 : vector<4x16x16xf32>
    %81 = math.exp %80 : vector<4x16x16xf32>
    %cst_13 = arith.constant dense<0.000000e+00> : vector<4x16xf32>
    %82 = vector.multi_reduction <add>, %81, %cst_13 [2] : vector<4x16x16xf32> to vector<4x16xf32>
    %83 = vector.shape_cast %82 : vector<4x16xf32> to vector<4x16x1xf32>
    %84 = tpu.reciprocal %83 {approx = true} : vector<4x16x1xf32> -> vector<4x16x1xf32>
    %85 = vector.broadcast %84 : vector<4x16x1xf32> to vector<4x16x16xf32>
    %86 = arith.mulf %81, %85 : vector<4x16x16xf32>
    %87 = arith.truncf %86 : vector<4x16x16xf32> to vector<4x16x16xbf16>
    "tpu.trace_start"() <{level = 10 : i32, message = "hqk,hkd->hqd"}> : () -> ()
    %cst_14 = arith.constant dense<0.000000e+00> : vector<4x16x8xf32>
    %88 = tpu.matmul %87, %52, %cst_14 {dimension_numbers = #tpu.dot_dimension_numbers<[2], [1], [1], [2], [0, 0, 0, 1, 1, 2], [0], [0]>} : vector<4x16x16xbf16>, vector<4x16x8xbf16>, vector<4x16x8xf32> -> vector<4x16x8xf32>
    "tpu.trace_stop"() : () -> ()
    %89 = arith.truncf %88 : vector<4x16x8xf32> to vector<4x16x8xbf16>
    %c0_15 = arith.constant 0 : index
    %c0_16 = arith.constant 0 : index
    %c0_17 = arith.constant 0 : index
    %90 = vector.load %arg3[%c0_15, %c0_16, %c0_17] : memref<4x8x32xbf16, #tpu.memory_space<vmem>>, vector<4x8x32xbf16>
    "tpu.trace_start"() <{level = 10 : i32, message = "hmd,hde->hme"}> : () -> ()
    %cst_18 = arith.constant dense<0.000000e+00> : vector<4x16x32xf32>
    %91 = tpu.matmul %89, %90, %cst_18 {dimension_numbers = #tpu.dot_dimension_numbers<[2], [1], [1], [2], [0, 0, 0, 1, 1, 2], [0], [0]>} : vector<4x16x8xbf16>, vector<4x8x32xbf16>, vector<4x16x32xf32> -> vector<4x16x32xf32>
    "tpu.trace_stop"() : () -> ()
    %cst_19 = arith.constant dense<0.000000e+00> : vector<16x32xf32>
    %92 = vector.multi_reduction <add>, %91, %cst_19 [0] : vector<4x16x32xf32> to vector<16x32xf32>
    %93 = vector.shape_cast %5 : vector<32xf32> to vector<1x32xf32>
    %94 = vector.broadcast %93 : vector<1x32xf32> to vector<16x32xf32>
    %95 = arith.addf %92, %94 : vector<16x32xf32>
    %96 = arith.addf %0, %95 : vector<16x32xf32>
    %cst_20 = arith.constant dense<0.000000e+00> : vector<16xf32>
    %97 = vector.multi_reduction <add>, %96, %cst_20 [1] : vector<16x32xf32> to vector<16xf32>
    %98 = vector.shape_cast %97 : vector<16xf32> to vector<16x1xf32>
    %cst_21 = arith.constant 3.200000e+01 : f32
    %99 = vector.broadcast %cst_21 : f32 to vector<16x1xf32>
    %100 = arith.divf %98, %99 : vector<16x1xf32>
    %101 = vector.broadcast %100 : vector<16x1xf32> to vector<16x32xf32>
    %102 = arith.subf %96, %101 : vector<16x32xf32>
    %103 = arith.mulf %102, %102 : vector<16x32xf32>
    %cst_22 = arith.constant dense<0.000000e+00> : vector<16xf32>
    %104 = vector.multi_reduction <add>, %103, %cst_22 [1] : vector<16x32xf32> to vector<16xf32>
    %105 = vector.shape_cast %104 : vector<16xf32> to vector<16x1xf32>
    %cst_23 = arith.constant 3.200000e+01 : f32
    %106 = vector.broadcast %cst_23 : f32 to vector<16x1xf32>
    %107 = arith.divf %105, %106 : vector<16x1xf32>
    %108 = vector.broadcast %100 : vector<16x1xf32> to vector<16x32xf32>
    %109 = arith.subf %96, %108 : vector<16x32xf32>
    %cst_24 = arith.constant 9.99999974E-6 : f32
    %110 = vector.broadcast %cst_24 : f32 to vector<16x1xf32>
    %111 = arith.addf %107, %110 : vector<16x1xf32>
    %112 = math.rsqrt %111 : vector<16x1xf32>
    %113 = vector.broadcast %112 : vector<16x1xf32> to vector<16x32xf32>
    %114 = arith.mulf %109, %113 : vector<16x32xf32>
    %115 = vector.shape_cast %7 : vector<32xf32> to vector<1x32xf32>
    %116 = vector.broadcast %115 : vector<1x32xf32> to vector<16x32xf32>
    %117 = arith.mulf %114, %116 : vector<16x32xf32>
    %118 = vector.shape_cast %9 : vector<32xf32> to vector<1x32xf32>
    %119 = vector.broadcast %118 : vector<1x32xf32> to vector<16x32xf32>
    %120 = arith.addf %117, %119 : vector<16x32xf32>
    %121 = arith.truncf %120 : vector<16x32xf32> to vector<16x32xbf16>
    %c0_25 = arith.constant 0 : index
    %c0_26 = arith.constant 0 : index
    %122 = vector.load %arg4[%c0_25, %c0_26] : memref<32x64xbf16, #tpu.memory_space<vmem>>, vector<32x64xbf16>
    %cst_27 = arith.constant dense<0.000000e+00> : vector<16x64xf32>
    %123 = tpu.matmul %121, %122, %cst_27 {dimension_numbers = #tpu.dot_dimension_numbers<[1], [0], [0], [1], [0, 0, 1, 1], [], []>} : vector<16x32xbf16>, vector<32x64xbf16>, vector<16x64xf32> -> vector<16x64xf32>
    %124 = vector.shape_cast %11 : vector<64xf32> to vector<1x64xf32>
    %125 = vector.broadcast %124 : vector<1x64xf32> to vector<16x64xf32>
    %126 = arith.addf %123, %125 : vector<16x64xf32>
    %127 = arith.negf %126 : vector<16x64xf32>
    %128 = math.exp %127 : vector<16x64xf32>
    %cst_28 = arith.constant 1.000000e+00 : f32
    %129 = vector.broadcast %cst_28 : f32 to vector<16x64xf32>
    %130 = arith.addf %129, %128 : vector<16x64xf32>
    %131 = arith.divf %129, %130 : vector<16x64xf32>
    %132 = arith.mulf %126, %131 : vector<16x64xf32>
    %133 = arith.truncf %132 : vector<16x64xf32> to vector<16x64xbf16>
    %c0_29 = arith.constant 0 : index
    %c0_30 = arith.constant 0 : index
    %134 = vector.load %arg5[%c0_29, %c0_30] : memref<64x32xbf16, #tpu.memory_space<vmem>>, vector<64x32xbf16>
    %cst_31 = arith.constant dense<0.000000e+00> : vector<16x32xf32>
    %135 = tpu.matmul %133, %134, %cst_31 {dimension_numbers = #tpu.dot_dimension_numbers<[1], [0], [0], [1], [0, 0, 1, 1], [], []>} : vector<16x64xbf16>, vector<64x32xbf16>, vector<16x32xf32> -> vector<16x32xf32>
    %136 = vector.shape_cast %13 : vector<32xf32> to vector<1x32xf32>
    %137 = vector.broadcast %136 : vector<1x32xf32> to vector<16x32xf32>
    %138 = arith.addf %135, %137 : vector<16x32xf32>
    %139 = arith.addf %120, %138 : vector<16x32xf32>
    %cst_32 = arith.constant dense<0.000000e+00> : vector<16xf32>
    %140 = vector.multi_reduction <add>, %139, %cst_32 [1] : vector<16x32xf32> to vector<16xf32>
    %141 = vector.shape_cast %140 : vector<16xf32> to vector<16x1xf32>
    %cst_33 = arith.constant 3.200000e+01 : f32
    %142 = vector.broadcast %cst_33 : f32 to vector<16x1xf32>
    %143 = arith.divf %141, %142 : vector<16x1xf32>
    %144 = vector.broadcast %143 : vector<16x1xf32> to vector<16x32xf32>
    %145 = arith.subf %139, %144 : vector<16x32xf32>
    %146 = arith.mulf %145, %145 : vector<16x32xf32>
    %cst_34 = arith.constant dense<0.000000e+00> : vector<16xf32>
    %147 = vector.multi_reduction <add>, %146, %cst_34 [1] : vector<16x32xf32> to vector<16xf32>
    %148 = vector.shape_cast %147 : vector<16xf32> to vector<16x1xf32>
    %cst_35 = arith.constant 3.200000e+01 : f32
    %149 = vector.broadcast %cst_35 : f32 to vector<16x1xf32>
    %150 = arith.divf %148, %149 : vector<16x1xf32>
    %151 = vector.broadcast %143 : vector<16x1xf32> to vector<16x32xf32>
    %152 = arith.subf %139, %151 : vector<16x32xf32>
    %cst_36 = arith.constant 9.99999974E-6 : f32
    %153 = vector.broadcast %cst_36 : f32 to vector<16x1xf32>
    %154 = arith.addf %150, %153 : vector<16x1xf32>
    %155 = math.rsqrt %154 : vector<16x1xf32>
    %156 = vector.broadcast %155 : vector<16x1xf32> to vector<16x32xf32>
    %157 = arith.mulf %152, %156 : vector<16x32xf32>
    %158 = vector.shape_cast %15 : vector<32xf32> to vector<1x32xf32>
    %159 = vector.broadcast %158 : vector<1x32xf32> to vector<16x32xf32>
    %160 = arith.mulf %157, %159 : vector<16x32xf32>
    %161 = vector.shape_cast %17 : vector<32xf32> to vector<1x32xf32>
    %162 = vector.broadcast %161 : vector<1x32xf32> to vector<16x32xf32>
    %163 = arith.addf %160, %162 : vector<16x32xf32>
    %c0_37 = arith.constant 0 : index
    %c0_38 = arith.constant 0 : index
    %164 = vector.load %arg7[%c0_37, %c0_38] : memref<16x32xf32, #tpu.memory_space<vmem>>, vector<16x32xf32>
    tpu.vector_store %arg7[%c0_37, %c0_38], %163 {strides = array<i32>} : memref<16x32xf32, #tpu.memory_space<vmem>>, vector<16x32xf32>,
    return
  }
  func.func @transform_0(%arg0: i32) -> (i32, i32) {
    %c0_i32 = arith.constant 0 : i32
    %c0_i32_0 = arith.constant 0 : i32
    %c0_i32_1 = arith.constant 0 : i32
    return %c0_i32, %c0_i32_0 : i32, i32
  }
  func.func @transform_1(%arg0: i32) -> (i32, i32) {
    %c0_i32 = arith.constant 0 : i32
    %c0_i32_0 = arith.constant 0 : i32
    %c0_i32_1 = arith.constant 0 : i32
    return %c0_i32, %c0_i32_0 : i32, i32
  }
  func.func @transform_2(%arg0: i32) -> (i32, i32, i32) {
    %c0_i32 = arith.constant 0 : i32
    %c0_i32_0 = arith.constant 0 : i32
    %c0_i32_1 = arith.constant 0 : i32
    %c0_i32_2 = arith.constant 0 : i32
    return %c0_i32, %c0_i32_0, %c0_i32_1 : i32, i32, i32
  }
  func.func @transform_3(%arg0: i32) -> (i32, i32) {
    %c0_i32 = arith.constant 0 : i32
    %c0_i32_0 = arith.constant 0 : i32
    %c0_i32_1 = arith.constant 0 : i32
    return %c0_i32, %c0_i32_0 : i32, i32
  }
  func.func @transform_4(%arg0: i32) -> (i32, i32) {
    %c0_i32 = arith.constant 0 : i32
    %c0_i32_0 = arith.constant 0 : i32
    %c0_i32_1 = arith.constant 0 : i32
    return %c0_i32, %c0_i32_0 : i32, i32
  }
  func.func @transform_5(%arg0: i32) -> (i32, i32) {
    %c0_i32 = arith.constant 0 : i32
    %c0_i32_0 = arith.constant 0 : i32
    %c0_i32_1 = arith.constant 0 : i32
    return %c0_i32, %c0_i32_0 : i32, i32
  }
  func.func @transform_6(%arg0: i32) -> (i32, i32) {
    %c0_i32 = arith.constant 0 : i32
    %c0_i32_0 = arith.constant 0 : i32
    %c0_i32_1 = arith.constant 0 : i32
    return %c0_i32, %c0_i32_0 : i32, i32
  }
}

</mosaic_0001>

<llo_original>
// kernel: tpu_custom_call.1
$region0: #{tpu_custom_call.1}
  #allocation0 [shape = 'u32[]', space=smem, size = 0x4, offset = 0x4, fixed_abs, tag = 'smem constant byte address 0x4 - core index']
  #allocation1 [shape = 'u32[72,128]{1,0:T(1,128)}', space=vmem, size = 0x9000, scoped, tag = 'internal scratch']
  %s0 = inlined_call_operand.vmem [shape: f32[16,32], index: 0, kind: input, shape index: {}]
  %s1 = inlined_call_operand.vmem [shape: bf16[32,96], index: 1, kind: input, shape index: {}]
  %s2 = inlined_call_operand.vmem [shape: bf16[4,8,32], index: 2, kind: input, shape index: {}]
  %s3 = inlined_call_operand.hbm [shape: bf16[32,64], index: 3, kind: input, shape index: {}]
  %s4 = inlined_call_operand.vmem [shape: bf16[64,32], index: 4, kind: input, shape index: {}]
  %s5 = inlined_call_operand.hbm [shape: f32[8,96], index: 5, kind: input, shape index: {}]
  %s6 = inlined_call_operand.hbm [shape: f32[16,32], index: 6, kind: output, shape index: {}]
  %s7 = sld [smem:[#allocation0]]
  $region42: #{tpu_custom_call.1} parent=0
    _
  %s9 = ssub.s32 1, %s7
  %s10 = scalar_select 0, %s9, %s7
  $region1: #{tpu_custom_call.1} parent=0
    #allocation2 [shape = 'u8[8192]{0}', space=vmem, size = 0x2000, scoped, tag = 'input window, operand 3, single buffered']
    #allocation3 [shape = 's32[1]{0}', space=sflag, size = 0x4, scoped, tag = 'scoped memory for tpu_custom_call.1']
    #allocation4 [shape = 's32[1]{0}', space=sflag, size = 0x4, scoped, tag = 'scoped memory for tpu_custom_call.1']
    #allocation5 [shape = 'u8[4096]{0}', space=vmem, size = 0x1000, scoped, tag = 'input window, operand 5, single buffered']
    #allocation6 [shape = 's32[1]{0}', space=sflag, size = 0x4, scoped, tag = 'scoped memory for tpu_custom_call.1']
    #allocation7 [shape = 'u8[8192]{0}', space=vmem, size = 0x2000, scoped, tag = 'output window, operand 0, single buffered']
    %11 = vsyncpa [#allocation3], 0
    %12 = vsyncpa [#allocation6], 0
    %13 = vsyncpa [#allocation4], 0
    // Predicated region
    $region2: #{tpu_custom_call.1} parent=1 // pred_check
      _
    $region3: #{tpu_custom_call.1} parent=1 // pred_check_branch
      %15 = sbr.rel (0) target = $region5
    $region4: #{tpu_custom_call.1} parent=1 // pred_region
      _
    $region5: #{tpu_custom_call.1} parent=1 // pred_fallthru
      _
    // Predicated region
    $region6: #{tpu_custom_call.1} parent=1 // pred_check
      _
    $region7: #{tpu_custom_call.1} parent=1 // pred_check_branch
      %17 = sbr.rel (0) target = $region9
    $region8: #{tpu_custom_call.1} parent=1 // pred_region
      _
    $region9: #{tpu_custom_call.1} parent=1 // pred_fallthru
      _
    // Predicated region
    $region10: #{tpu_custom_call.1} parent=1 // pred_check
      _
    $region11: #{tpu_custom_call.1} parent=1 // pred_check_branch
      %19 = sbr.rel (0) target = $region13
    $region12: #{tpu_custom_call.1} parent=1 // pred_region
      _
    $region13: #{tpu_custom_call.1} parent=1 // pred_fallthru
      _
    // Predicated region
    $region14: #{tpu_custom_call.1} parent=1 // pred_check
      _
    $region15: #{tpu_custom_call.1} parent=1 // pred_check_branch
      %21 = sbr.rel (0) target = $region17
    $region16: #{tpu_custom_call.1} parent=1 // pred_region
      %23 = vsyncadd [#allocation3], 0
      %s24 = sshll.u32 %s3, 4
      %s25 = int_to_ptr.hbm [resolvable:$true] %s24
      %s26 = sshll.u32 [#allocation2], 4
      %s27 = int_to_ptr.vmem [resolvable:$true] %s26
      %32 = dma.hbm_to_vmem [thread:$0]  %s25, 256, %s27, [#allocation3], 64, 64, 4
    $region17: #{tpu_custom_call.1} parent=1 // pred_fallthru
      _
    // Predicated region
    $region18: #{tpu_custom_call.1} parent=1 // pred_check
      _
    $region19: #{tpu_custom_call.1} parent=1 // pred_check_branch
      %34 = sbr.rel (0) target = $region21
    $region20: #{tpu_custom_call.1} parent=1 // pred_region
      _
    $region21: #{tpu_custom_call.1} parent=1 // pred_fallthru
      _
    // Predicated region
    $region22: #{tpu_custom_call.1} parent=1 // pred_check
      _
    $region23: #{tpu_custom_call.1} parent=1 // pred_check_branch
      %36 = sbr.rel (0) target = $region25
    $region24: #{tpu_custom_call.1} parent=1 // pred_region
      %38 = vsyncadd [#allocation6], 0
      %s40 = sshll.u32 %s5, 4
      %s41 = int_to_ptr.hbm [resolvable:$true] %s40
      %s42 = sshll.u32 [#allocation5], 4
      %s43 = int_to_ptr.vmem [resolvable:$true] %s42
      %45 = dma.hbm_to_vmem [thread:$0]  %s41, 128, %s43, [#allocation6]
    $region25: #{tpu_custom_call.1} parent=1 // pred_fallthru
      _
    // Predicated region
    $region26: #{tpu_custom_call.1} parent=1 // pred_check
      _
    $region27: #{tpu_custom_call.1} parent=1 // pred_check_branch
      %47 = sbr.rel (0) target = $region29
    $region28: #{tpu_custom_call.1} parent=1 // pred_region
      %49 = dma.done [#allocation3], 256
    $region29: #{tpu_custom_call.1} parent=1 // pred_fallthru
      _
    // Predicated region
    $region30: #{tpu_custom_call.1} parent=1 // pred_check
      _
    $region31: #{tpu_custom_call.1} parent=1 // pred_check_branch
      %51 = sbr.rel (0) target = $region33
    $region32: #{tpu_custom_call.1} parent=1 // pred_region
      %53 = dma.done [#allocation6], 128
    $region33: #{tpu_custom_call.1} parent=1 // pred_fallthru
      _
    %v55 = vld [vmem:[%s0] sm:$0xff]
    %v56 = vld [vmem:[%s0 + $0x8] sm:$0xff]
    %v57 = vld [vmem:[#allocation5] sm:$0xff]
    %v58 = vpack.c.bf16 %v56, %v55
    %v59 = vld [vmem:[%s1] sm:$0xf]
    %v60 = vld [vmem:[%s1 + $0x4] sm:$0xf]
    %v61 = vld [vmem:[%s1 + $0x8] sm:$0xf]
    %v62 = vld [vmem:[%s1 + $0xc] sm:$0xf]
    %v63 = vperm.slane %v57, 0
    %v68 = vunpack.c.l.b16 %v59
    %v69 = vunpack.c.l.b16 %v60
    %v70 = vunpack.c.l.b16 %v61
    %v71 = vunpack.c.l.b16 %v62
    %v72 = vpack.c.b16 %v69, %v68
    %v73 = vpack.c.b16 %v71, %v70
    %vm76 = vcmask 261120
    %v78 = vsel %vm76, %v58, 0
    %80 = vmatpush.bf16.msra.mxu0 0
    %81 = vmatpush.bf16.msra.mxu0 0
    %82 = vmatpush.bf16.msra.mxu0 0
    %83 = vmatpush.bf16.msra.mxu0 0
    %84 = vmatpush.bf16.msra.mxu0 0
    %85 = vmatpush.bf16.msra.mxu0 0
    %86 = vmatpush.bf16.msra.mxu0 %v73
    %87 = vmatpush.bf16.msra.mxu0 %v72
    %88 = vmatmul.bf16.gmra.mxu0 %v78
    %v89 = vpop.f32.mrf.mxu0
    %v90 = vadd.f32 %v63, %v89
    %v91 = vpop.f32.mrf.mxu0
    %v92 = vadd.f32 %v63, %v91
    %93 = vdwg.mxu0
    %96 = vrot.lane.b32.xlu0 %v90, 120
    %v97 = vpop.permute.xlu0 %96
    %98 = vrot.lane.b32.xlu0 %v92, 120
    %v99 = vpop.permute.xlu0 %98
    %102 = vrot.lane.b32.xlu0 %v90, 112
    %v103 = vpop.permute.xlu0 %102
    %104 = vrot.lane.b32.xlu0 %v92, 112
    %v105 = vpop.permute.xlu0 %104
    %108 = vrot.lane.b32.xlu0 %v90, 104
    %v109 = vpop.permute.xlu0 %108
    %110 = vrot.lane.b32.xlu0 %v92, 104
    %v111 = vpop.permute.xlu0 %110
    %114 = vrot.lane.b32.xlu0 %v90, 96
    %v115 = vpop.permute.xlu0 %114
    %116 = vrot.lane.b32.xlu0 %v92, 96
    %v117 = vpop.permute.xlu0 %116
    %120 = vrot.lane.b32.xlu0 %v90, 88
    %v121 = vpop.permute.xlu0 %120
    %122 = vrot.lane.b32.xlu0 %v92, 88
    %v123 = vpop.permute.xlu0 %122
    %126 = vrot.lane.b32.xlu0 %v90, 80
    %v127 = vpop.permute.xlu0 %126
    %128 = vrot.lane.b32.xlu0 %v92, 80
    %v129 = vpop.permute.xlu0 %128
    %132 = vrot.lane.b32.xlu0 %v90, 72
    %v133 = vpop.permute.xlu0 %132
    %134 = vrot.lane.b32.xlu0 %v92, 72
    %v135 = vpop.permute.xlu0 %134
    %138 = vrot.lane.b32.xlu0 %v90, 64
    %v139 = vpop.permute.xlu0 %138
    %140 = vrot.lane.b32.xlu0 %v92, 64
    %v141 = vpop.permute.xlu0 %140
    %144 = vrot.lane.b32.xlu0 %v90, 56
    %v145 = vpop.permute.xlu0 %144
    %146 = vrot.lane.b32.xlu0 %v92, 56
    %v147 = vpop.permute.xlu0 %146
    %150 = vrot.lane.b32.xlu0 %v90, 48
    %v151 = vpop.permute.xlu0 %150
    %152 = vrot.lane.b32.xlu0 %v92, 48
    %v153 = vpop.permute.xlu0 %152
    %156 = vrot.lane.b32.xlu0 %v90, 40
    %v157 = vpop.permute.xlu0 %156
    %158 = vrot.lane.b32.xlu0 %v92, 40
    %v159 = vpop.permute.xlu0 %158
    %v162 = vpack.c.bf16 %v90, %v90
    %v163 = vpack.c.bf16 %v92, %v92
    %v164 = vpack.c.bf16 %v97, %v97
    %v165 = vpack.c.bf16 %v99, %v99
    %v166 = vpack.c.bf16 %v103, %v103
    %v167 = vpack.c.bf16 %v105, %v105
    %v168 = vpack.c.bf16 %v109, %v109
    %v169 = vpack.c.bf16 %v111, %v111
    %v170 = vpack.c.bf16 %v115, %v115
    %v171 = vpack.c.bf16 %v117, %v117
    %v172 = vpack.c.bf16 %v121, %v121
    %v173 = vpack.c.bf16 %v123, %v123
    %v174 = vpack.c.bf16 %v127, %v127
    %v175 = vpack.c.bf16 %v129, %v129
    %v176 = vpack.c.bf16 %v133, %v133
    %v177 = vpack.c.bf16 %v135, %v135
    %v178 = vpack.c.bf16 %v139, %v139
    %v179 = vpack.c.bf16 %v141, %v141
    %v180 = vpack.c.bf16 %v145, %v145
    %v181 = vpack.c.bf16 %v147, %v147
    %v182 = vpack.c.bf16 %v151, %v151
    %v183 = vpack.c.bf16 %v153, %v153
    %v184 = vpack.c.bf16 %v157, %v157
    %v185 = vpack.c.bf16 %v159, %v159
    %v186 = vlaneseq
    %v187 = vshrl.u32 %v186, 7
    %v188 = vadd.s32 %v187, 8
    %v189 = vlaneseq
    %v190 = vand.u32 %v189, 127
    %v191 = vcvt.s32.f32 %v187
    %v192 = vcvt.s32.f32 %v188
    %v193 = vadd.f32 %v191, 0.5
    %v194 = vadd.f32 %v192, 0.5
    %v195 = vmul.f32 %v193, 0.125
    %v196 = vmul.f32 %v194, 0.125
    %v197 = vfloor.f32 %v195
    %v198 = vfloor.f32 %v196
    %v199 = vcvt.s32.f32 %v190
    %v200 = vadd.f32 %v199, 0.5
    %v201 = vmul.f32 %v200, 0.125
    %v202 = vfloor.f32 %v201
    %vm203 = vcmp.eq.f32.partialorder %v197, %v202
    %vm204 = vcmp.eq.f32.partialorder %v198, %v202
    %vm205 = vcmp.le.s32.totalorder %v190, %v187
    %vm206 = vcmp.le.s32.totalorder %v190, %v188
    %vm207 = vmand %vm203, %vm205
    %vm208 = vmand %vm204, %vm206
    %v209 = vsel %vm207, 0.0, -1e+30
    %v210 = vsel %vm208, 0.0, -1e+30
    %v213 = vunpack.c.l.b16 %v162
    %v214 = vunpack.c.l.b16 %v163
    %v215 = vpack.c.b16 %v214, %v213
    %v218 = vunpack.c.l.b16 %v170
    %v219 = vunpack.c.l.b16 %v171
    %v220 = vpack.c.b16 %v219, %v218
    %vm221 = vcmask 64512
    %v223 = vsel %vm221, %v215, 0
    %v226 = vsel %vm221, %v220, 0
    %228 = vmatpush.bf16.xpose.msra.mxu0 0
    %229 = vmatpush.bf16.xpose.msra.mxu0 0
    %230 = vmatpush.bf16.xpose.msra.mxu0 0
    %231 = vmatpush.bf16.xpose.msra.mxu0 0
    %232 = vmatpush.bf16.xpose.msra.mxu0 0
    %233 = vmatpush.bf16.xpose.msra.mxu0 0
    %234 = vmatpush.bf16.xpose.msra.mxu0 0
    %235 = vmatpush.bf16.xpose.msra.mxu0 %v226
    %236 = vmatmul.bf16.gmra.mxu0 %v223
    %v237 = vpop.f32.mrf.mxu0
    %v238 = vadd.f32 %v209, %v237
    %v239 = vpop.f32.mrf.mxu0
    %v240 = vadd.f32 %v210, %v239
    %241 = vdwg.mxu0
    %v244 = vunpack.c.l.b16 %v164
    %v245 = vunpack.c.l.b16 %v165
    %v246 = vpack.c.b16 %v245, %v244
    %v249 = vunpack.c.l.b16 %v172
    %v250 = vunpack.c.l.b16 %v173
    %v251 = vpack.c.b16 %v250, %v249
    %v253 = vsel %vm221, %v246, 0
    %v256 = vsel %vm221, %v251, 0
    %258 = vmatpush.bf16.xpose.msra.mxu0 0
    %259 = vmatpush.bf16.xpose.msra.mxu0 0
    %260 = vmatpush.bf16.xpose.msra.mxu0 0
    %261 = vmatpush.bf16.xpose.msra.mxu0 0
    %262 = vmatpush.bf16.xpose.msra.mxu0 0
    %263 = vmatpush.bf16.xpose.msra.mxu0 0
    %264 = vmatpush.bf16.xpose.msra.mxu0 0
    %265 = vmatpush.bf16.xpose.msra.mxu0 %v256
    %266 = vmatmul.bf16.gmra.mxu0 %v253
    %v267 = vpop.f32.mrf.mxu0
    %v268 = vadd.f32 %v209, %v267
    %v269 = vpop.f32.mrf.mxu0
    %v270 = vadd.f32 %v210, %v269
    %271 = vdwg.mxu0
    %v274 = vunpack.c.l.b16 %v166
    %v275 = vunpack.c.l.b16 %v167
    %v276 = vpack.c.b16 %v275, %v274
    %v279 = vunpack.c.l.b16 %v174
    %v280 = vunpack.c.l.b16 %v175
    %v281 = vpack.c.b16 %v280, %v279
    %v283 = vsel %vm221, %v276, 0
    %v286 = vsel %vm221, %v281, 0
    %288 = vmatpush.bf16.xpose.msra.mxu0 0
    %289 = vmatpush.bf16.xpose.msra.mxu0 0
    %290 = vmatpush.bf16.xpose.msra.mxu0 0
    %291 = vmatpush.bf16.xpose.msra.mxu0 0
    %292 = vmatpush.bf16.xpose.msra.mxu0 0
    %293 = vmatpush.bf16.xpose.msra.mxu0 0
    %294 = vmatpush.bf16.xpose.msra.mxu0 0
    %295 = vmatpush.bf16.xpose.msra.mxu0 %v286
    %296 = vmatmul.bf16.gmra.mxu0 %v283
    %v297 = vpop.f32.mrf.mxu0
    %v298 = vadd.f32 %v209, %v297
    %v299 = vpop.f32.mrf.mxu0
    %v300 = vadd.f32 %v210, %v299
    %301 = vdwg.mxu0
    %v304 = vunpack.c.l.b16 %v168
    %v305 = vunpack.c.l.b16 %v169
    %v306 = vpack.c.b16 %v305, %v304
    %v309 = vunpack.c.l.b16 %v176
    %v310 = vunpack.c.l.b16 %v177
    %v311 = vpack.c.b16 %v310, %v309
    %v313 = vsel %vm221, %v306, 0
    %v316 = vsel %vm221, %v311, 0
    %318 = vmatpush.bf16.xpose.msra.mxu0 0
    %319 = vmatpush.bf16.xpose.msra.mxu0 0
    %320 = vmatpush.bf16.xpose.msra.mxu0 0
    %321 = vmatpush.bf16.xpose.msra.mxu0 0
    %322 = vmatpush.bf16.xpose.msra.mxu0 0
    %323 = vmatpush.bf16.xpose.msra.mxu0 0
    %324 = vmatpush.bf16.xpose.msra.mxu0 0
    %325 = vmatpush.bf16.xpose.msra.mxu0 %v316
    %326 = vmatmul.bf16.gmra.mxu0 %v313
    %v327 = vpop.f32.mrf.mxu0
    %v328 = vadd.f32 %v209, %v327
    %v329 = vpop.f32.mrf.mxu0
    %v330 = vadd.f32 %v210, %v329
    %331 = vdwg.mxu0
    %vm332 = vcmask 130048
    %v333 = vsel %vm332, %v238, -inf
    %334 = vmax.xlane.f32.xlu0 %v333
    %v335 = vpop.xlane.xlu0 %334
    %v336 = vsel %vm332, %v240, -inf
    %337 = vmax.xlane.f32.xlu0 %v336
    %v338 = vpop.xlane.xlu0 %337
    %v339 = vsel %vm332, %v268, -inf
    %340 = vmax.xlane.f32.xlu0 %v339
    %v341 = vpop.xlane.xlu0 %340
    %v342 = vsel %vm332, %v270, -inf
    %343 = vmax.xlane.f32.xlu0 %v342
    %v344 = vpop.xlane.xlu0 %343
    %v345 = vsel %vm332, %v298, -inf
    %346 = vmax.xlane.f32.xlu0 %v345
    %v347 = vpop.xlane.xlu0 %346
    %v348 = vsel %vm332, %v300, -inf
    %349 = vmax.xlane.f32.xlu0 %v348
    %v350 = vpop.xlane.xlu0 %349
    %v351 = vsel %vm332, %v328, -inf
    %352 = vmax.xlane.f32.xlu0 %v351
    %v353 = vpop.xlane.xlu0 %352
    %v354 = vsel %vm332, %v330, -inf
    %355 = vmax.xlane.f32.xlu0 %v354
    %v356 = vpop.xlane.xlu0 %355
    %v357 = vsub.f32 %v238, %v335
    %v358 = vsub.f32 %v240, %v338
    %v359 = vsub.f32 %v268, %v341
    %v360 = vsub.f32 %v270, %v344
    %v361 = vsub.f32 %v298, %v347
    %v362 = vsub.f32 %v300, %v350
    %v363 = vsub.f32 %v328, %v353
    %v364 = vsub.f32 %v330, %v356
    %v365 = vmul.f32 %v357, 1.442695
    %v366 = vpow.pop %v365
    %v367 = vmul.f32 %v358, 1.442695
    %v368 = vpow.pop %v367
    %v369 = vmul.f32 %v359, 1.442695
    %v370 = vpow.pop %v369
    %v371 = vmul.f32 %v360, 1.442695
    %v372 = vpow.pop %v371
    %v373 = vmul.f32 %v361, 1.442695
    %v374 = vpow.pop %v373
    %v375 = vmul.f32 %v362, 1.442695
    %v376 = vpow.pop %v375
    %v377 = vmul.f32 %v363, 1.442695
    %v378 = vpow.pop %v377
    %v379 = vmul.f32 %v364, 1.442695
    %v380 = vpow.pop %v379
    %v381 = vsel %vm332, %v366, 0.0
    %382 = vadd.xlane.f32.xlu0 %v381
    %v383 = vpop.xlane.xlu0 %382
    %v384 = vsel %vm332, %v368, 0.0
    %385 = vadd.xlane.f32.xlu0 %v384
    %v386 = vpop.xlane.xlu0 %385
    %v387 = vsel %vm332, %v370, 0.0
    %388 = vadd.xlane.f32.xlu0 %v387
    %v389 = vpop.xlane.xlu0 %388
    %v390 = vsel %vm332, %v372, 0.0
    %391 = vadd.xlane.f32.xlu0 %v390
    %v392 = vpop.xlane.xlu0 %391
    %v393 = vsel %vm332, %v374, 0.0
    %394 = vadd.xlane.f32.xlu0 %v393
    %v395 = vpop.xlane.xlu0 %394
    %v396 = vsel %vm332, %v376, 0.0
    %397 = vadd.xlane.f32.xlu0 %v396
    %v398 = vpop.xlane.xlu0 %397
    %v399 = vsel %vm332, %v378, 0.0
    %400 = vadd.xlane.f32.xlu0 %v399
    %v401 = vpop.xlane.xlu0 %400
    %v402 = vsel %vm332, %v380, 0.0
    %403 = vadd.xlane.f32.xlu0 %v402
    %v404 = vpop.xlane.xlu0 %403
    %v405 = vrcp.pop %v383
    %v406 = vrcp.pop %v386
    %v407 = vrcp.pop %v389
    %v408 = vrcp.pop %v392
    %v409 = vrcp.pop %v395
    %v410 = vrcp.pop %v398
    %v411 = vrcp.pop %v401
    %v412 = vrcp.pop %v404
    %v413 = vmul.f32 %v366, %v405
    %v414 = vmul.f32 %v368, %v406
    %v415 = vmul.f32 %v370, %v407
    %v416 = vmul.f32 %v372, %v408
    %v417 = vmul.f32 %v374, %v409
    %v418 = vmul.f32 %v376, %v410
    %v419 = vmul.f32 %v378, %v411
    %v420 = vmul.f32 %v380, %v412
    %v421 = vpack.c.bf16 %v413, %v413
    %v422 = vpack.c.bf16 %v414, %v414
    %v423 = vpack.c.bf16 %v415, %v415
    %v424 = vpack.c.bf16 %v416, %v416
    %v425 = vpack.c.bf16 %v417, %v417
    %v426 = vpack.c.bf16 %v418, %v418
    %v427 = vpack.c.bf16 %v419, %v419
    %v428 = vpack.c.bf16 %v420, %v420
    %v431 = vunpack.c.l.b16 %v421
    %v432 = vunpack.c.l.b16 %v422
    %v433 = vpack.c.b16 %v432, %v431
    %v436 = vunpack.c.l.b16 %v178
    %v437 = vunpack.c.l.b16 %v179
    %v438 = vpack.c.b16 %v437, %v436
    %v441 = vsel %vm332, %v433, 0
    %443 = vmatpush.bf16.msra.mxu0 0
    %444 = vmatpush.bf16.msra.mxu0 0
    %445 = vmatpush.bf16.msra.mxu0 0
    %446 = vmatpush.bf16.msra.mxu0 0
    %447 = vmatpush.bf16.msra.mxu0 0
    %448 = vmatpush.bf16.msra.mxu0 0
    %449 = vmatpush.bf16.msra.mxu0 0
    %450 = vmatpush.bf16.msra.mxu0 %v438
    %451 = vmatmul.bf16.gmra.mxu0 %v441
    %v452 = vpop.f32.mrf.mxu0
    %v453 = vadd.f32 0.0, %v452
    %v454 = vpop.f32.mrf.mxu0
    %v455 = vadd.f32 0.0, %v454
    %456 = vdwg.mxu0
    %v459 = vunpack.c.l.b16 %v423
    %v460 = vunpack.c.l.b16 %v424
    %v461 = vpack.c.b16 %v460, %v459
    %v464 = vunpack.c.l.b16 %v180
    %v465 = vunpack.c.l.b16 %v181
    %v466 = vpack.c.b16 %v465, %v464
    %v469 = vsel %vm332, %v461, 0
    %471 = vmatpush.bf16.msra.mxu0 0
    %472 = vmatpush.bf16.msra.mxu0 0
    %473 = vmatpush.bf16.msra.mxu0 0
    %474 = vmatpush.bf16.msra.mxu0 0
    %475 = vmatpush.bf16.msra.mxu0 0
    %476 = vmatpush.bf16.msra.mxu0 0
    %477 = vmatpush.bf16.msra.mxu0 0
    %478 = vmatpush.bf16.msra.mxu0 %v466
    %479 = vmatmul.bf16.gmra.mxu0 %v469
    %v480 = vpop.f32.mrf.mxu0
    %v481 = vadd.f32 0.0, %v480
    %v482 = vpop.f32.mrf.mxu0
    %v483 = vadd.f32 0.0, %v482
    %484 = vdwg.mxu0
    %v487 = vunpack.c.l.b16 %v425
    %v488 = vunpack.c.l.b16 %v426
    %v489 = vpack.c.b16 %v488, %v487
    %v492 = vunpack.c.l.b16 %v182
    %v493 = vunpack.c.l.b16 %v183
    %v494 = vpack.c.b16 %v493, %v492
    %v497 = vsel %vm332, %v489, 0
    %499 = vmatpush.bf16.msra.mxu0 0
    %500 = vmatpush.bf16.msra.mxu0 0
    %501 = vmatpush.bf16.msra.mxu0 0
    %502 = vmatpush.bf16.msra.mxu0 0
    %503 = vmatpush.bf16.msra.mxu0 0
    %504 = vmatpush.bf16.msra.mxu0 0
    %505 = vmatpush.bf16.msra.mxu0 0
    %506 = vmatpush.bf16.msra.mxu0 %v494
    %507 = vmatmul.bf16.gmra.mxu0 %v497
    %v508 = vpop.f32.mrf.mxu0
    %v509 = vadd.f32 0.0, %v508
    %v510 = vpop.f32.mrf.mxu0
    %v511 = vadd.f32 0.0, %v510
    %512 = vdwg.mxu0
    %v515 = vunpack.c.l.b16 %v427
    %v516 = vunpack.c.l.b16 %v428
    %v517 = vpack.c.b16 %v516, %v515
    %v520 = vunpack.c.l.b16 %v184
    %v521 = vunpack.c.l.b16 %v185
    %v522 = vpack.c.b16 %v521, %v520
    %v525 = vsel %vm332, %v517, 0
    %527 = vmatpush.bf16.msra.mxu0 0
    %528 = vmatpush.bf16.msra.mxu0 0
    %529 = vmatpush.bf16.msra.mxu0 0
    %530 = vmatpush.bf16.msra.mxu0 0
    %531 = vmatpush.bf16.msra.mxu0 0
    %532 = vmatpush.bf16.msra.mxu0 0
    %533 = vmatpush.bf16.msra.mxu0 0
    %534 = vmatpush.bf16.msra.mxu0 %v522
    %535 = vmatmul.bf16.gmra.mxu0 %v525
    %v536 = vpop.f32.mrf.mxu0
    %v537 = vadd.f32 0.0, %v536
    %v538 = vpop.f32.mrf.mxu0
    %v539 = vadd.f32 0.0, %v538
    %540 = vdwg.mxu0
    %v541 = vpack.c.bf16 %v453, %v453
    %v542 = vpack.c.bf16 %v455, %v455
    %v543 = vpack.c.bf16 %v481, %v481
    %v544 = vpack.c.bf16 %v483, %v483
    %v545 = vpack.c.bf16 %v509, %v509
    %v546 = vpack.c.bf16 %v511, %v511
    %v547 = vpack.c.bf16 %v537, %v537
    %v548 = vpack.c.bf16 %v539, %v539
    %v549 = vld [vmem:[%s2] sm:$0xf]
    %v550 = vld [vmem:[%s2 + $0x4] sm:$0xf]
    %v551 = vld [vmem:[%s2 + $0x8] sm:$0xf]
    %v552 = vld [vmem:[%s2 + $0xc] sm:$0xf]
    %v555 = vunpack.c.l.b16 %v541
    %v556 = vunpack.c.l.b16 %v542
    %v557 = vpack.c.b16 %v556, %v555
    %v559 = vsel %vm221, %v557, 0
    %vm561 = vcmask 1043456
    %v563 = vsel %vm561, %v549, 0
    %565 = vmatpush.bf16.msra.mxu0 0
    %566 = vmatpush.bf16.msra.mxu0 0
    %567 = vmatpush.bf16.msra.mxu0 0
    %568 = vmatpush.bf16.msra.mxu0 0
    %569 = vmatpush.bf16.msra.mxu0 0
    %570 = vmatpush.bf16.msra.mxu0 0
    %571 = vmatpush.bf16.msra.mxu0 0
    %572 = vmatpush.bf16.msra.mxu0 %v563
    %573 = vmatmul.bf16.gmra.mxu0 %v559
    %v574 = vpop.f32.mrf.mxu0
    %v575 = vadd.f32 0.0, %v574
    %v576 = vpop.f32.mrf.mxu0
    %v577 = vadd.f32 0.0, %v576
    %578 = vdwg.mxu0
    %v581 = vunpack.c.l.b16 %v543
    %v582 = vunpack.c.l.b16 %v544
    %v583 = vpack.c.b16 %v582, %v581
    %v585 = vsel %vm221, %v583, 0
    %v588 = vsel %vm561, %v550, 0
    %590 = vmatpush.bf16.msra.mxu0 0
    %591 = vmatpush.bf16.msra.mxu0 0
    %592 = vmatpush.bf16.msra.mxu0 0
    %593 = vmatpush.bf16.msra.mxu0 0
    %594 = vmatpush.bf16.msra.mxu0 0
    %595 = vmatpush.bf16.msra.mxu0 0
    %596 = vmatpush.bf16.msra.mxu0 0
    %597 = vmatpush.bf16.msra.mxu0 %v588
    %598 = vmatmul.bf16.gmra.mxu0 %v585
    %v599 = vpop.f32.mrf.mxu0
    %v600 = vadd.f32 0.0, %v599
    %v601 = vpop.f32.mrf.mxu0
    %v602 = vadd.f32 0.0, %v601
    %603 = vdwg.mxu0
    %v606 = vunpack.c.l.b16 %v545
    %v607 = vunpack.c.l.b16 %v546
    %v608 = vpack.c.b16 %v607, %v606
    %v610 = vsel %vm221, %v608, 0
    %v613 = vsel %vm561, %v551, 0
    %615 = vmatpush.bf16.msra.mxu0 0
    %616 = vmatpush.bf16.msra.mxu0 0
    %617 = vmatpush.bf16.msra.mxu0 0
    %618 = vmatpush.bf16.msra.mxu0 0
    %619 = vmatpush.bf16.msra.mxu0 0
    %620 = vmatpush.bf16.msra.mxu0 0
    %621 = vmatpush.bf16.msra.mxu0 0
    %622 = vmatpush.bf16.msra.mxu0 %v613
    %623 = vmatmul.bf16.gmra.mxu0 %v610
    %v624 = vpop.f32.mrf.mxu0
    %v625 = vadd.f32 0.0, %v624
    %v626 = vpop.f32.mrf.mxu0
    %v627 = vadd.f32 0.0, %v626
    %628 = vdwg.mxu0
    %v631 = vunpack.c.l.b16 %v547
    %v632 = vunpack.c.l.b16 %v548
    %v633 = vpack.c.b16 %v632, %v631
    %v635 = vsel %vm221, %v633, 0
    %v638 = vsel %vm561, %v552, 0
    %640 = vmatpush.bf16.msra.mxu0 0
    %641 = vmatpush.bf16.msra.mxu0 0
    %642 = vmatpush.bf16.msra.mxu0 0
    %643 = vmatpush.bf16.msra.mxu0 0
    %644 = vmatpush.bf16.msra.mxu0 0
    %645 = vmatpush.bf16.msra.mxu0 0
    %646 = vmatpush.bf16.msra.mxu0 0
    %647 = vmatpush.bf16.msra.mxu0 %v638
    %648 = vmatmul.bf16.gmra.mxu0 %v635
    %v649 = vpop.f32.mrf.mxu0
    %v650 = vadd.f32 0.0, %v649
    %v651 = vpop.f32.mrf.mxu0
    %v652 = vadd.f32 0.0, %v651
    %653 = vdwg.mxu0
    %v654 = vsel %vm76, %v575, 0.0
    %v655 = vsel %vm76, %v600, 0.0
    %v656 = vadd.f32 %v654, %v655
    %v657 = vsel %vm76, %v625, 0.0
    %v658 = vadd.f32 %v656, %v657
    %v659 = vsel %vm76, %v650, 0.0
    %v660 = vadd.f32 %v658, %v659
    %v661 = vsel %vm76, %v577, 0.0
    %v662 = vsel %vm76, %v602, 0.0
    %v663 = vadd.f32 %v661, %v662
    %v664 = vsel %vm76, %v627, 0.0
    %v665 = vadd.f32 %v663, %v664
    %v666 = vsel %vm76, %v652, 0.0
    %v667 = vadd.f32 %v665, %v666
    %v668 = vperm.slane %v57, 1
    %v669 = vadd.f32 %v660, %v668
    %v670 = vadd.f32 %v667, %v668
    %v671 = vadd.f32 %v55, %v669
    %v672 = vadd.f32 %v56, %v670
    %v673 = vsel %vm76, %v671, 0.0
    %674 = vadd.xlane.f32.xlu0 %v673
    %v675 = vpop.xlane.xlu0 %674
    %v676 = vsel %vm76, %v672, 0.0
    %677 = vadd.xlane.f32.xlu0 %v676
    %v678 = vpop.xlane.xlu0 %677
    %v679 = vrcp.pop 32.0
    %v680 = vmul.f32 32.0, %v679
    %v681 = vsub.f32 1.0, %v680
    %v682 = vmul.f32 %v679, %v681
    %v683 = vadd.f32 %v679, %v682
    %vm684 = vweird.f32 %v679
    %v685 = vsel %vm684, %v679, %v683
    %v686 = vmul.f32 %v675, %v685
    %v687 = vmul.f32 %v678, %v685
    %v688 = vsub.f32 %v671, %v686
    %v689 = vsub.f32 %v672, %v687
    %v690 = vmul.f32 %v688, %v688
    %v691 = vmul.f32 %v689, %v689
    %v692 = vsel %vm76, %v690, 0.0
    %693 = vadd.xlane.f32.xlu0 %v692
    %v694 = vpop.xlane.xlu0 %693
    %v695 = vsel %vm76, %v691, 0.0
    %696 = vadd.xlane.f32.xlu0 %v695
    %v697 = vpop.xlane.xlu0 %696
    %v698 = vmul.f32 %v694, %v685
    %v699 = vmul.f32 %v697, %v685
    %v700 = vadd.f32 %v698, 1e-05
    %v701 = vadd.f32 %v699, 1e-05
    %v702 = vrsqrt.pop %v700
    %v703 = vmul.f32 %v702, %v700
    %v704 = vmul.f32 %v703, %v702
    %v705 = vmul.f32 0.5, %v704
    %v706 = vsub.f32 1.5, %v705
    %v707 = vmul.f32 %v702, %v706
    %vm708 = vweird.f32 %v700
    %vm709 = vweird.f32 %v702
    %vm710 = vmor %vm708, %vm709
    %v711 = vsel %vm710, %v702, %v707
    %v712 = vrsqrt.pop %v701
    %v713 = vmul.f32 %v712, %v701
    %v714 = vmul.f32 %v713, %v712
    %v715 = vmul.f32 0.5, %v714
    %v716 = vsub.f32 1.5, %v715
    %v717 = vmul.f32 %v712, %v716
    %vm718 = vweird.f32 %v701
    %vm719 = vweird.f32 %v712
    %vm720 = vmor %vm718, %vm719
    %v721 = vsel %vm720, %v712, %v717
    %v722 = vmul.f32 %v688, %v711
    %v723 = vmul.f32 %v689, %v721
    %v724 = vperm.slane %v57, 2
    %v725 = vmul.f32 %v722, %v724
    %v726 = vmul.f32 %v723, %v724
    %v727 = vperm.slane %v57, 3
    %v728 = vadd.f32 %v725, %v727
    %v729 = vadd.f32 %v726, %v727
    %v730 = vpack.c.bf16 %v729, %v728
    %v731 = vld [vmem:[#allocation2] sm:$0xf]
    %v732 = vld [vmem:[#allocation2 + $0x4] sm:$0xf]
    %v733 = vld [vmem:[#allocation2 + $0x8] sm:$0xf]
    %v734 = vld [vmem:[#allocation2 + $0xc] sm:$0xf]
    %v735 = vperm.slane %v57, 4
    %v740 = vunpack.c.l.b16 %v731
    %v741 = vunpack.c.l.b16 %v732
    %v742 = vunpack.c.l.b16 %v733
    %v743 = vunpack.c.l.b16 %v734
    %v744 = vpack.c.b16 %v741, %v740
    %v745 = vpack.c.b16 %v743, %v742
    %v749 = vsel %vm76, %v730, 0
    %751 = vmatpush.bf16.msra.mxu0 0
    %752 = vmatpush.bf16.msra.mxu0 0
    %753 = vmatpush.bf16.msra.mxu0 0
    %754 = vmatpush.bf16.msra.mxu0 0
    %755 = vmatpush.bf16.msra.mxu0 0
    %756 = vmatpush.bf16.msra.mxu0 0
    %757 = vmatpush.bf16.msra.mxu0 %v745
    %758 = vmatpush.bf16.msra.mxu0 %v744
    %759 = vmatmul.bf16.gmra.mxu0 %v749
    %v760 = vpop.f32.mrf.mxu0
    %v761 = vadd.f32 %v735, %v760
    %v762 = vpop.f32.mrf.mxu0
    %v763 = vadd.f32 %v735, %v762
    %764 = vdwg.mxu0
    %v765 = vxor.u32 %v761, 2147483648
    %v766 = vxor.u32 %v763, 2147483648
    %v767 = vmul.f32 %v765, 1.442695
    %v768 = vpow.pop %v767
    %v769 = vmul.f32 %v766, 1.442695
    %v770 = vpow.pop %v769
    %v771 = vadd.f32 %v768, 1.0
    %v772 = vadd.f32 %v770, 1.0
    %v773 = vrcp.pop %v771
    %v774 = vmul.f32 %v771, %v773
    %v775 = vsub.f32 1.0, %v774
    %v776 = vmul.f32 %v773, %v775
    %v777 = vadd.f32 %v773, %v776
    %vm778 = vweird.f32 %v771
    %vm779 = vweird.f32 %v773
    %vm780 = vmor %vm778, %vm779
    %v781 = vsel %vm780, %v773, %v777
    %v782 = vand.u32 2147483647, %v771
    %vm783 = vcmp.eq.f32.partialorder %v782, 8.507059e+37
    %v784 = vand.u32 %v771, 2147483648
    %v785 = vor.u32 1.1754944e-38, %v784
    %v786 = vsel %vm783, %v785, %v781
    %v787 = vmul.f32 1.0, %v786
    %v788 = vrcp.pop %v772
    %v789 = vmul.f32 %v772, %v788
    %v790 = vsub.f32 1.0, %v789
    %v791 = vmul.f32 %v788, %v790
    %v792 = vadd.f32 %v788, %v791
    %vm793 = vweird.f32 %v772
    %vm794 = vweird.f32 %v788
    %vm795 = vmor %vm793, %vm794
    %v796 = vsel %vm795, %v788, %v792
    %v797 = vand.u32 2147483647, %v772
    %vm798 = vcmp.eq.f32.partialorder %v797, 8.507059e+37
    %v799 = vand.u32 %v772, 2147483648
    %v800 = vor.u32 1.1754944e-38, %v799
    %v801 = vsel %vm798, %v800, %v796
    %v802 = vmul.f32 1.0, %v801
    %v803 = vmul.f32 %v761, %v787
    %v804 = vmul.f32 %v763, %v802
    %v805 = vpack.c.bf16 %v804, %v803
    %v806 = vld [vmem:[%s4] sm:$0xf]
    %v807 = vld [vmem:[%s4 + $0x4] sm:$0xf]
    %v808 = vld [vmem:[%s4 + $0x8] sm:$0xf]
    %v809 = vld [vmem:[%s4 + $0xc] sm:$0xf]
    %v810 = vld [vmem:[%s4 + $0x10] sm:$0xf]
    %v811 = vld [vmem:[%s4 + $0x14] sm:$0xf]
    %v812 = vld [vmem:[%s4 + $0x18] sm:$0xf]
    %v813 = vld [vmem:[%s4 + $0x1c] sm:$0xf]
    %v814 = vperm.slane %v57, 5
    %v823 = vunpack.c.l.b16 %v806
    %v824 = vunpack.c.l.b16 %v807
    %v825 = vunpack.c.l.b16 %v808
    %v826 = vunpack.c.l.b16 %v809
    %v827 = vunpack.c.l.b16 %v810
    %v828 = vunpack.c.l.b16 %v811
    %v829 = vunpack.c.l.b16 %v812
    %v830 = vunpack.c.l.b16 %v813
    %v831 = vpack.c.b16 %v824, %v823
    %v832 = vpack.c.b16 %v826, %v825
    %v833 = vpack.c.b16 %v828, %v827
    %v834 = vpack.c.b16 %v830, %v829
    %vm839 = vcmask 523264
    %v841 = vsel %vm839, %v805, 0
    %843 = vmatpush.bf16.msra.mxu0 0
    %844 = vmatpush.bf16.msra.mxu0 0
    %845 = vmatpush.bf16.msra.mxu0 0
    %846 = vmatpush.bf16.msra.mxu0 0
    %847 = vmatpush.bf16.msra.mxu0 %v834
    %848 = vmatpush.bf16.msra.mxu0 %v833
    %849 = vmatpush.bf16.msra.mxu0 %v832
    %850 = vmatpush.bf16.msra.mxu0 %v831
    %851 = vmatmul.bf16.gmra.mxu0 %v841
    %v852 = vpop.f32.mrf.mxu0
    %v853 = vadd.f32 %v814, %v852
    %v854 = vpop.f32.mrf.mxu0
    %v855 = vadd.f32 %v814, %v854
    %856 = vdwg.mxu0
    %v857 = vadd.f32 %v728, %v853
    %v858 = vadd.f32 %v729, %v855
    %v859 = vsel %vm76, %v857, 0.0
    %860 = vadd.xlane.f32.xlu0 %v859
    %v861 = vpop.xlane.xlu0 %860
    %v862 = vsel %vm76, %v858, 0.0
    %863 = vadd.xlane.f32.xlu0 %v862
    %v864 = vpop.xlane.xlu0 %863
    %v865 = vmul.f32 %v861, %v685
    %v866 = vmul.f32 %v864, %v685
    %v867 = vsub.f32 %v857, %v865
    %v868 = vsub.f32 %v858, %v866
    %v869 = vmul.f32 %v867, %v867
    %v870 = vmul.f32 %v868, %v868
    %v871 = vsel %vm76, %v869, 0.0
    %872 = vadd.xlane.f32.xlu0 %v871
    %v873 = vpop.xlane.xlu0 %872
    %v874 = vsel %vm76, %v870, 0.0
    %875 = vadd.xlane.f32.xlu0 %v874
    %v876 = vpop.xlane.xlu0 %875
    %v877 = vmul.f32 %v873, %v685
    %v878 = vmul.f32 %v876, %v685
    %v879 = vadd.f32 %v877, 1e-05
    %v880 = vadd.f32 %v878, 1e-05
    %v881 = vrsqrt.pop %v879
    %v882 = vmul.f32 %v881, %v879
    %v883 = vmul.f32 %v882, %v881
    %v884 = vmul.f32 0.5, %v883
    %v885 = vsub.f32 1.5, %v884
    %v886 = vmul.f32 %v881, %v885
    %vm887 = vweird.f32 %v879
    %vm888 = vweird.f32 %v881
    %vm889 = vmor %vm887, %vm888
    %v890 = vsel %vm889, %v881, %v886
    %v891 = vrsqrt.pop %v880
    %v892 = vmul.f32 %v891, %v880
    %v893 = vmul.f32 %v892, %v891
    %v894 = vmul.f32 0.5, %v893
    %v895 = vsub.f32 1.5, %v894
    %v896 = vmul.f32 %v891, %v895
    %vm897 = vweird.f32 %v880
    %vm898 = vweird.f32 %v891
    %vm899 = vmor %vm897, %vm898
    %v900 = vsel %vm899, %v891, %v896
    %v901 = vmul.f32 %v867, %v890
    %v902 = vmul.f32 %v868, %v900
    %v903 = vperm.slane %v57, 6
    %v904 = vmul.f32 %v901, %v903
    %v905 = vmul.f32 %v902, %v903
    %v906 = vperm.slane %v57, 7
    %v907 = vadd.f32 %v904, %v906
    %v908 = vadd.f32 %v905, %v906
    %909 = vst.msk [vmem:[#allocation7] sm:$0xff] %vm76, %v907
    %910 = vst.msk [vmem:[#allocation7 + $0x8] sm:$0xff] %vm76, %v908
    // Predicated region
    $region34: #{tpu_custom_call.1} parent=1 // pred_check
      _
    $region35: #{tpu_custom_call.1} parent=1 // pred_check_branch
      %912 = sbr.rel (0) target = $region37
    $region36: #{tpu_custom_call.1} parent=1 // pred_region
      %914 = vsyncadd [#allocation4], 0
      %s915 = sshll.u32 [#allocation7], 4
      %s916 = int_to_ptr.vmem [resolvable:$true] %s915
      %s917 = sshll.u32 %s6, 4
      %s918 = int_to_ptr.hbm [resolvable:$true] %s917
      %923 = dma.vmem_to_hbm [thread:$0]  %s916, 256, %s918, [#allocation4], 128, 128, 8
    $region37: #{tpu_custom_call.1} parent=1 // pred_fallthru
      _
    // Predicated region
    $region38: #{tpu_custom_call.1} parent=1 // pred_check
      _
    $region39: #{tpu_custom_call.1} parent=1 // pred_check_branch
      %925 = sbr.rel (0) target = $region41
    $region40: #{tpu_custom_call.1} parent=1 // pred_region
      %927 = dma.done [#allocation4], 256
    $region41: #{tpu_custom_call.1} parent=1 // pred_fallthru
      _
    %928 = vsyncpa [#allocation3], 1
    %929 = vsyncpa [#allocation6], 1
    %930 = vsyncpa [#allocation4], 1

</llo_original>
